<compile_context>
chip_gen: v5e
topology: v5e:2x2
jax: 0.10.0
libtpu: 0.0.40
codegen_flags: <defaults>
</compile_context>

<pallas_src>
import jax
import jax.numpy as jnp
from jax.experimental import pallas as pl
from jax.experimental.pallas import tpu as pltpu


def _fuse_table_kernel(embT_ref, w1_ref, b1_ref, w2_ref, b2_ref, tableT_ref):
    # Computes table.T where table = relu(relu(emb @ W1.T + b1) @ W2.T + b2).
    # In transposed space: tableT = relu(W2 @ relu(W1 @ emb.T + b1col) + b2col)  -> (D, V)
    h1 = jnp.dot(w1_ref[...], embT_ref[...],
                 preferred_element_type=jnp.float32) + b1_ref[...]
    h1 = jnp.maximum(h1, 0.0)
    h2 = jnp.dot(w2_ref[...], h1,
                 preferred_element_type=jnp.float32) + b2_ref[...]
    tableT_ref[...] = jnp.maximum(h2, 0.0)


def _lookup_kernel(idx_ref, tableT_ref, outT_ref):
    # idx_ref: (1, TT) int32 (lane-dense tokens), tableT_ref: (D, V), outT_ref: (D, TT)
    idx = idx_ref[...]                                                   # (1, TT)
    vocab = tableT_ref.shape[1]
    iota = jax.lax.broadcasted_iota(jnp.int32, (vocab, idx.shape[1]), 0)  # (V, TT)
    onehot = (iota == idx).astype(jnp.float32)                            # (V, TT)
    # Single MXU matmul per tile; token axis is lane-dense on the output store.
    outT_ref[...] = jnp.dot(tableT_ref[...], onehot,
                            preferred_element_type=jnp.float32)


def integer_embedding_forward(x_int, emb_table, w1, b1, w2, b2, *, token_tile=512):
    """x_int: (B, S) int32 indices. Returns (B, S, D) float32."""
    B, S = x_int.shape
    V, D = emb_table.shape
    N = B * S
    n_pad = token_tile * pl.cdiv(N, token_tile)

    # Kernel 1: fold embedding table + both linears + ReLUs into one (D, V) table.
    # Tiny one-shot kernel (whole arrays resident in VMEM, no grid).
    tableT = pl.pallas_call(
        _fuse_table_kernel,
        out_shape=jax.ShapeDtypeStruct((D, V), jnp.float32),
    )(
        emb_table.T.astype(jnp.float32),          # (D, V)
        w1.astype(jnp.float32),                   # (D, D)  (torch Linear weight, untransposed)
        b1.reshape(D, 1).astype(jnp.float32),     # (D, 1)
        w2.astype(jnp.float32),                   # (D, D)
        b2.reshape(D, 1).astype(jnp.float32),     # (D, 1)
    )

    # Lane-dense, padded token indices (pad value 0 is a valid row; padded cols dropped).
    idx = x_int.reshape(1, N).astype(jnp.int32)
    if n_pad != N:
        idx = jnp.pad(idx, ((0, 0), (0, n_pad - N)))

    # Kernel 2: per-tile one-hot gather against the fused table, transposed output.
    outT = pl.pallas_call(
        _lookup_kernel,
        out_shape=jax.ShapeDtypeStruct((D, n_pad), jnp.float32),
        grid_spec=pltpu.PrefetchScalarGridSpec(
            num_scalar_prefetch=0,
            grid=(n_pad // token_tile,),
            in_specs=[
                pl.BlockSpec((1, token_tile), lambda i: (0, i)),   # indices (lane-dense)
                pl.BlockSpec((D, V), lambda i: (0, 0)),            # fused table (resident)
            ],
            out_specs=pl.BlockSpec((D, token_tile), lambda i: (0, i)),  # lane-dense store
        ),
        compiler_params=pltpu.CompilerParams(
            dimension_semantics=("parallel",)),
    )(idx, tableT)

    # Layout plumbing back to (B, S, D).
    return outT[:, :N].T.reshape(B, S, D)


def _reference(x_int, emb_table, w1, b1, w2, b2):
    x = emb_table[x_int]                          # (B, S, D)
    x = jnp.maximum(x @ w1.T + b1, 0.0)
    x = jnp.maximum(x @ w2.T + b2, 0.0)
    return x


if __name__ == "__main__":
    num_embeddings = 16
    embedding_dim = 32
    B, S = 2, 8

    key = jax.random.PRNGKey(0)
    k_idx, k_emb, k_w1, k_b1, k_w2, k_b2 = jax.random.split(key, 6)

    # Deterministic synthetic parameters (shapes match nn.Embedding / nn.Linear).
    emb_table = jax.random.normal(k_emb, (num_embeddings, embedding_dim), jnp.float32) * 0.1
    w1 = jax.random.normal(k_w1, (embedding_dim, embedding_dim), jnp.float32) * 0.1
    b1 = jax.random.normal(k_b1, (embedding_dim,), jnp.float32) * 0.1
    w2 = jax.random.normal(k_w2, (embedding_dim, embedding_dim), jnp.float32) * 0.1
    b2 = jax.random.normal(k_b2, (embedding_dim,), jnp.float32) * 0.1

    x = jax.random.randint(k_idx, (B, S), 0, num_embeddings, jnp.int32)

    out = integer_embedding_forward(x, emb_table, w1, b1, w2, b2)
    out = jax.block_until_ready(out)

    ref = _reference(x, emb_table, w1, b1, w2, b2)
    assert out.shape == (B, S, embedding_dim)
    assert jnp.allclose(out, ref, atol=1e-5, rtol=1e-5), float(jnp.max(jnp.abs(out - ref)))

    print("KERNEL_OK")
</pallas_src>

<mosaic_0001>
module attributes {stable_mosaic.version = 11 : i64} {
  func.func @_fuse_table_kernel(%arg0: memref<32x16xf32, #tpu.memory_space<vmem>>, %arg1: memref<32x32xf32, #tpu.memory_space<vmem>>, %arg2: memref<32x1xf32, #tpu.memory_space<vmem>>, %arg3: memref<32x32xf32, #tpu.memory_space<vmem>>, %arg4: memref<32x1xf32, #tpu.memory_space<vmem>>, %arg5: memref<32x16xf32, #tpu.memory_space<vmem>>) attributes {dimension_semantics = [], scalar_prefetch = 0 : i64, scratch_operands = 0 : i64, tpu.core_type = #tpu.core_type<tc>} {
    %c0 = arith.constant 0 : index
    %c0_0 = arith.constant 0 : index
    %0 = vector.load %arg1[%c0, %c0_0] : memref<32x32xf32, #tpu.memory_space<vmem>>, vector<32x32xf32>
    %c0_1 = arith.constant 0 : index
    %c0_2 = arith.constant 0 : index
    %1 = vector.load %arg0[%c0_1, %c0_2] : memref<32x16xf32, #tpu.memory_space<vmem>>, vector<32x16xf32>
    %cst = arith.constant dense<0.000000e+00> : vector<32x16xf32>
    %2 = tpu.matmul %0, %1, %cst {dimension_numbers = #tpu.dot_dimension_numbers<[1], [0], [0], [1], [0, 0, 1, 1], [], []>} : vector<32x32xf32>, vector<32x16xf32>, vector<32x16xf32> -> vector<32x16xf32>
    %c0_3 = arith.constant 0 : index
    %c0_4 = arith.constant 0 : index
    %3 = vector.load %arg2[%c0_3, %c0_4] : memref<32x1xf32, #tpu.memory_space<vmem>>, vector<32x1xf32>
    %4 = vector.broadcast %3 : vector<32x1xf32> to vector<32x16xf32>
    %5 = arith.addf %2, %4 : vector<32x16xf32>
    %cst_5 = arith.constant 0.000000e+00 : f32
    %6 = vector.broadcast %cst_5 : f32 to vector<32x16xf32>
    %7 = arith.maximumf %5, %6 : vector<32x16xf32>
    %c0_6 = arith.constant 0 : index
    %c0_7 = arith.constant 0 : index
    %8 = vector.load %arg3[%c0_6, %c0_7] : memref<32x32xf32, #tpu.memory_space<vmem>>, vector<32x32xf32>
    %cst_8 = arith.constant dense<0.000000e+00> : vector<32x16xf32>
    %9 = tpu.matmul %8, %7, %cst_8 {dimension_numbers = #tpu.dot_dimension_numbers<[1], [0], [0], [1], [0, 0, 1, 1], [], []>} : vector<32x32xf32>, vector<32x16xf32>, vector<32x16xf32> -> vector<32x16xf32>
    %c0_9 = arith.constant 0 : index
    %c0_10 = arith.constant 0 : index
    %10 = vector.load %arg4[%c0_9, %c0_10] : memref<32x1xf32, #tpu.memory_space<vmem>>, vector<32x1xf32>
    %11 = vector.broadcast %10 : vector<32x1xf32> to vector<32x16xf32>
    %12 = arith.addf %9, %11 : vector<32x16xf32>
    %cst_11 = arith.constant 0.000000e+00 : f32
    %13 = vector.broadcast %cst_11 : f32 to vector<32x16xf32>
    %14 = arith.maximumf %12, %13 : vector<32x16xf32>
    %c0_12 = arith.constant 0 : index
    %c0_13 = arith.constant 0 : index
    %15 = vector.load %arg5[%c0_12, %c0_13] : memref<32x16xf32, #tpu.memory_space<vmem>>, vector<32x16xf32>
    tpu.vector_store %arg5[%c0_12, %c0_13], %14 {strides = array<i32>} : memref<32x16xf32, #tpu.memory_space<vmem>>, vector<32x16xf32>,
    return
  }
}

</mosaic_0001>

<llo_original>
// kernel: tpu_custom_call.1
$region0: #{tpu_custom_call.1}
  #allocation0 [shape = 'u32[]', space=smem, size = 0x4, offset = 0x4, fixed_abs, tag = 'smem constant byte address 0x4 - core index']
  #allocation1 [shape = 'u32[72,128]{1,0:T(1,128)}', space=vmem, size = 0x9000, scoped, tag = 'internal scratch']
  %s0 = inlined_call_operand.vmem [shape: f32[32,16], index: 0, kind: input, shape index: {}]
  %s1 = inlined_call_operand.vmem [shape: f32[32,32], index: 1, kind: input, shape index: {}]
  %s2 = inlined_call_operand.vmem [shape: f32[32,1], index: 2, kind: input, shape index: {}]
  %s3 = inlined_call_operand.vmem [shape: f32[32,32], index: 3, kind: input, shape index: {}]
  %s4 = inlined_call_operand.vmem [shape: f32[32,1], index: 4, kind: input, shape index: {}]
  %s5 = inlined_call_operand.vmem [shape: f32[32,16], index: 5, kind: output, shape index: {}]
  %s6 = sld [smem:[#allocation0]]
  $region30: #{tpu_custom_call.1} parent=0
    _
  %s8 = ssub.s32 1, %s6
  %s9 = scalar_select 0, %s8, %s6
  // Predicated region
  $region2: #{tpu_custom_call.1} parent=0 // pred_check
    _
  $region3: #{tpu_custom_call.1} parent=0 // pred_check_branch
    %11 = sbr.rel (0) target = $region5
  $region4: #{tpu_custom_call.1} parent=0 // pred_region
    _
  $region5: #{tpu_custom_call.1} parent=0 // pred_fallthru
    _
  // Predicated region
  $region6: #{tpu_custom_call.1} parent=0 // pred_check
    _
  $region7: #{tpu_custom_call.1} parent=0 // pred_check_branch
    %13 = sbr.rel (0) target = $region9
  $region8: #{tpu_custom_call.1} parent=0 // pred_region
    _
  $region9: #{tpu_custom_call.1} parent=0 // pred_fallthru
    _
  // Predicated region
  $region10: #{tpu_custom_call.1} parent=0 // pred_check
    _
  $region11: #{tpu_custom_call.1} parent=0 // pred_check_branch
    %15 = sbr.rel (0) target = $region13
  $region12: #{tpu_custom_call.1} parent=0 // pred_region
    _
  $region13: #{tpu_custom_call.1} parent=0 // pred_fallthru
    _
  // Predicated region
  $region14: #{tpu_custom_call.1} parent=0 // pred_check
    _
  $region15: #{tpu_custom_call.1} parent=0 // pred_check_branch
    %17 = sbr.rel (0) target = $region17
  $region16: #{tpu_custom_call.1} parent=0 // pred_region
    _
  $region17: #{tpu_custom_call.1} parent=0 // pred_fallthru
    _
  // Predicated region
  $region18: #{tpu_custom_call.1} parent=0 // pred_check
    _
  $region19: #{tpu_custom_call.1} parent=0 // pred_check_branch
    %19 = sbr.rel (0) target = $region21
  $region20: #{tpu_custom_call.1} parent=0 // pred_region
    _
  $region21: #{tpu_custom_call.1} parent=0 // pred_fallthru
    _
  %v20 = vld [vmem:[%s1] sm:$0xff]
  %v21 = vld [vmem:[%s1 + $0x8] sm:$0xff]
  %v22 = vld [vmem:[%s1 + $0x10] sm:$0xff]
  %v23 = vld [vmem:[%s1 + $0x18] sm:$0xff]
  %v24 = vld [vmem:[%s0] sm:$0xff]
  %v25 = vld [vmem:[%s0 + $0x8] sm:$0xff]
  %v26 = vld [vmem:[%s0 + $0x10] sm:$0xff]
  %v27 = vld [vmem:[%s0 + $0x18] sm:$0xff]
  %v28 = vld [vmem:[%s2] sm:$0xff]
  %v29 = vld [vmem:[%s2 + $0x8] sm:$0xff]
  %v30 = vld [vmem:[%s2 + $0x10] sm:$0xff]
  %v31 = vld [vmem:[%s2 + $0x18] sm:$0xff]
  %33 = vset.pattern.permute.xlu0 0
  %34 = vperm.xlu0 %33, %v28
  %v35 = vpop.permute.xlu0 %34
  %38 = vset.pattern.permute.xlu0 0
  %39 = vperm.xlu0 %38, %v29
  %v40 = vpop.permute.xlu0 %39
  %43 = vset.pattern.permute.xlu0 0
  %44 = vperm.xlu0 %43, %v30
  %v45 = vpop.permute.xlu0 %44
  %48 = vset.pattern.permute.xlu0 0
  %49 = vperm.xlu0 %48, %v31
  %v50 = vpop.permute.xlu0 %49
  %vm52 = vcmask 261120
  %v54 = vsel %vm52, %v20, 0
  %v57 = vsel %vm52, %v21, 0
  %v60 = vsel %vm52, %v22, 0
  %v63 = vsel %vm52, %v23, 0
  %65 = vmatpush.msra.mxu0 0.0
  %66 = vmatpush.msra.mxu0 0.0
  %67 = vmatpush.msra.mxu0 0.0
  %68 = vmatpush.msra.mxu0 0.0
  %69 = vmatpush.msra.mxu0 0.0
  %70 = vmatpush.msra.mxu0 0.0
  %71 = vmatpush.msra.mxu0 0.0
  %72 = vmatpush.msra.mxu0 0.0
  %73 = vmatpush.msra.mxu0 0.0
  %74 = vmatpush.msra.mxu0 0.0
  %75 = vmatpush.msra.mxu0 0.0
  %76 = vmatpush.msra.mxu0 0.0
  %77 = vmatpush.msra.mxu0 %v27
  %78 = vmatpush.msra.mxu0 %v26
  %79 = vmatpush.msra.mxu0 %v25
  %80 = vmatpush.msra.mxu0 %v24
  %81 = vmatmul.f32.gmra.mxu0 %v54
  %v82 = vpop.f32.mrf.mxu0
  %v83 = vadd.f32 %v35, %v82
  %84 = vmatmul.f32.gmra.mxu0 %v57
  %v85 = vpop.f32.mrf.mxu0
  %v86 = vadd.f32 %v40, %v85
  %87 = vmatmul.f32.gmra.mxu0 %v60
  %v88 = vpop.f32.mrf.mxu0
  %v89 = vadd.f32 %v45, %v88
  %90 = vmatmul.f32.gmra.mxu0 %v63
  %v91 = vpop.f32.mrf.mxu0
  %v92 = vadd.f32 %v50, %v91
  %93 = vdwg.mxu0
  %v94 = vmax.f32 %v83, 0.0
  %v95 = vmax.f32 %v86, 0.0
  %v96 = vmax.f32 %v89, 0.0
  %v97 = vmax.f32 %v92, 0.0
  %v98 = vld [vmem:[%s3] sm:$0xff]
  %v99 = vld [vmem:[%s3 + $0x8] sm:$0xff]
  %v100 = vld [vmem:[%s3 + $0x10] sm:$0xff]
  %v101 = vld [vmem:[%s3 + $0x18] sm:$0xff]
  %v102 = vld [vmem:[%s4] sm:$0xff]
  %v103 = vld [vmem:[%s4 + $0x8] sm:$0xff]
  %v104 = vld [vmem:[%s4 + $0x10] sm:$0xff]
  %v105 = vld [vmem:[%s4 + $0x18] sm:$0xff]
  %107 = vset.pattern.permute.xlu0 0
  %108 = vperm.xlu0 %107, %v102
  %v109 = vpop.permute.xlu0 %108
  %112 = vset.pattern.permute.xlu0 0
  %113 = vperm.xlu0 %112, %v103
  %v114 = vpop.permute.xlu0 %113
  %117 = vset.pattern.permute.xlu0 0
  %118 = vperm.xlu0 %117, %v104
  %v119 = vpop.permute.xlu0 %118
  %122 = vset.pattern.permute.xlu0 0
  %123 = vperm.xlu0 %122, %v105
  %v124 = vpop.permute.xlu0 %123
  %v127 = vsel %vm52, %v98, 0
  %v130 = vsel %vm52, %v99, 0
  %v133 = vsel %vm52, %v100, 0
  %v136 = vsel %vm52, %v101, 0
  %138 = vmatpush.msra.mxu0 0.0
  %139 = vmatpush.msra.mxu0 0.0
  %140 = vmatpush.msra.mxu0 0.0
  %141 = vmatpush.msra.mxu0 0.0
  %142 = vmatpush.msra.mxu0 0.0
  %143 = vmatpush.msra.mxu0 0.0
  %144 = vmatpush.msra.mxu0 0.0
  %145 = vmatpush.msra.mxu0 0.0
  %146 = vmatpush.msra.mxu0 0.0
  %147 = vmatpush.msra.mxu0 0.0
  %148 = vmatpush.msra.mxu0 0.0
  %149 = vmatpush.msra.mxu0 0.0
  %150 = vmatpush.msra.mxu0 %v97
  %151 = vmatpush.msra.mxu0 %v96
  %152 = vmatpush.msra.mxu0 %v95
  %153 = vmatpush.msra.mxu0 %v94
  %154 = vmatmul.f32.gmra.mxu0 %v127
  %v155 = vpop.f32.mrf.mxu0
  %v156 = vadd.f32 %v109, %v155
  %157 = vmatmul.f32.gmra.mxu0 %v130
  %v158 = vpop.f32.mrf.mxu0
  %v159 = vadd.f32 %v114, %v158
  %160 = vmatmul.f32.gmra.mxu0 %v133
  %v161 = vpop.f32.mrf.mxu0
  %v162 = vadd.f32 %v119, %v161
  %163 = vmatmul.f32.gmra.mxu0 %v136
  %v164 = vpop.f32.mrf.mxu0
  %v165 = vadd.f32 %v124, %v164
  %166 = vdwg.mxu0
  %v167 = vmax.f32 %v156, 0.0
  %v168 = vmax.f32 %v159, 0.0
  %v169 = vmax.f32 %v162, 0.0
  %v170 = vmax.f32 %v165, 0.0
  %vm171 = vcmask 130048
  %172 = vst.msk [vmem:[%s5] sm:$0xff] %vm171, %v167
  %173 = vst.msk [vmem:[%s5 + $0x8] sm:$0xff] %vm171, %v168
  %174 = vst.msk [vmem:[%s5 + $0x10] sm:$0xff] %vm171, %v169
  %175 = vst.msk [vmem:[%s5 + $0x18] sm:$0xff] %vm171, %v170
  // Predicated region
  $region22: #{tpu_custom_call.1} parent=0 // pred_check
    _
  $region23: #{tpu_custom_call.1} parent=0 // pred_check_branch
    %177 = sbr.rel (0) target = $region25
  $region24: #{tpu_custom_call.1} parent=0 // pred_region
    _
  $region25: #{tpu_custom_call.1} parent=0 // pred_fallthru
    _
  // Predicated region
  $region26: #{tpu_custom_call.1} parent=0 // pred_check
    _
  $region27: #{tpu_custom_call.1} parent=0 // pred_check_branch
    %179 = sbr.rel (0) target = $region29
  $region28: #{tpu_custom_call.1} parent=0 // pred_region
    _
  $region29: #{tpu_custom_call.1} parent=0 // pred_fallthru
    _

</llo_original>
